<compile_context>
chip_gen: v7x
topology: tpu7x:2x2x1
jax: 0.10.0
libtpu: 0.0.40
codegen_flags: <defaults>
</compile_context>

<pallas_src>
import functools

import jax
import jax.numpy as jnp
from jax.experimental import pallas as pl
from jax.experimental.pallas import tpu as pltpu

LANE = 128
SUBLANE_BF16 = 16          # bf16 packs 2 rows per sublane -> batch tiles % 16
MAX_BATCH_TILE = 2048      # large tiles amortize per-grid-step overhead
MIN_ROWS_FOR_SPLIT = 256   # force >=2 grid steps so v7x's 2 TCs both get work


def _round_up(x, m):
    return ((x + m - 1) // m) * m


def actor_critic_kernel(x_ref, w1_ref, b1_ref, w2_ref, b2_ref,
                        wh_ref, bh_ref, out_ref):
    # fc1 + relu  (x already bf16; f32 accumulation, bias/relu in f32)
    h1 = jnp.dot(x_ref[...], w1_ref[...],
                 preferred_element_type=jnp.float32) + b1_ref[...]
    h1 = jnp.maximum(h1, 0.0)
    # fc2 + relu
    h2 = jnp.dot(h1.astype(jnp.bfloat16), w2_ref[...],
                 preferred_element_type=jnp.float32) + b2_ref[...]
    h2 = jnp.maximum(h2, 0.0)
    # fused policy+value heads -> single lane-dense (tb, 128) slab.
    # bf16 store halves the dominant HBM write stream (f32 accumulate kept).
    heads = jnp.dot(h2.astype(jnp.bfloat16), wh_ref[...],
                    preferred_element_type=jnp.float32) + bh_ref[...]
    out_ref[...] = heads.astype(out_ref.dtype)


def pack_params(params):
    """Pack pi/v heads into one lane-padded matmul; matmul weights as bf16."""
    n_actions = params["wpi"].shape[1]
    fc2_dims = params["wpi"].shape[0]
    head_pad = _round_up(n_actions + 1, LANE)

    w_heads = jnp.zeros((fc2_dims, head_pad), jnp.bfloat16)
    w_heads = w_heads.at[:, :n_actions].set(params["wpi"].astype(jnp.bfloat16))
    w_heads = w_heads.at[:, n_actions:n_actions + 1].set(
        params["wv"].astype(jnp.bfloat16))

    b_heads = jnp.zeros((1, head_pad), jnp.float32)
    b_heads = b_heads.at[:, :n_actions].set(params["bpi"])
    b_heads = b_heads.at[:, n_actions:n_actions + 1].set(params["bv"])

    return dict(
        w1=params["w1"].astype(jnp.bfloat16), b1=params["b1"],
        w2=params["w2"].astype(jnp.bfloat16), b2=params["b2"],
        w_heads=w_heads, b_heads=b_heads,
    )


@functools.partial(jax.jit, static_argnames=("n_actions",))
def actor_critic_forward(state, packed, n_actions):
    """Returns (pi, v) like ActorCriticNetwork.forward."""
    B, input_dim = state.shape
    fc1_dims = packed["w1"].shape[1]
    fc2_dims = packed["w2"].shape[1]
    head_pad = packed["w_heads"].shape[1]

    # Tile selection: as large as possible (fewer grid steps), but >=2 steps
    # when B is big enough (v7x megacore), and rounded so each tile wastes
    # fewer than 16 padded rows.
    n_tiles = max(1, -(-B // MAX_BATCH_TILE))
    if B >= MIN_ROWS_FOR_SPLIT:
        n_tiles = max(n_tiles, 2)
    tb = _round_up(-(-B // n_tiles), SUBLANE_BF16)
    b_padded = n_tiles * tb

    # One-time bf16 cast outside the kernel (halves the x DMA stream).
    x = state.astype(jnp.bfloat16)
    if b_padded != B:
        x = jnp.pad(x, ((0, b_padded - B), (0, 0)))

    out = pl.pallas_call(
        actor_critic_kernel,
        out_shape=jax.ShapeDtypeStruct((b_padded, head_pad), jnp.bfloat16),
        grid=(n_tiles,),
        in_specs=[
            pl.BlockSpec((tb, input_dim), lambda i: (i, 0)),        # x tile
            pl.BlockSpec((input_dim, fc1_dims), lambda i: (0, 0)),  # w1 (resident)
            pl.BlockSpec((1, fc1_dims), lambda i: (0, 0)),          # b1
            pl.BlockSpec((fc1_dims, fc2_dims), lambda i: (0, 0)),   # w2 (resident)
            pl.BlockSpec((1, fc2_dims), lambda i: (0, 0)),          # b2
            pl.BlockSpec((fc2_dims, head_pad), lambda i: (0, 0)),   # fused head W
            pl.BlockSpec((1, head_pad), lambda i: (0, 0)),          # fused head b
        ],
        out_specs=pl.BlockSpec((tb, head_pad), lambda i: (i, 0)),
        compiler_params=pltpu.CompilerParams(
            dimension_semantics=("parallel",)),
    )(x, packed["w1"], packed["b1"], packed["w2"], packed["b2"],
      packed["w_heads"], packed["b_heads"])

    out = out[:B].astype(jnp.float32)
    pi = out[:, :n_actions]
    v = out[:, n_actions:n_actions + 1]
    return pi, v


def init_params(key, input_dim, n_actions, fc1_dims=256, fc2_dims=256):
    """Deterministic init mimicking nn.Linear default (uniform +/- 1/sqrt(fan_in))."""
    def linear(key, fan_in, fan_out):
        kw, kb = jax.random.split(key)
        bound = 1.0 / jnp.sqrt(fan_in)
        w = jax.random.uniform(kw, (fan_in, fan_out), jnp.float32, -bound, bound)
        b = jax.random.uniform(kb, (1, fan_out), jnp.float32, -bound, bound)
        return w, b

    k1, k2, k3, k4 = jax.random.split(key, 4)
    w1, b1 = linear(k1, input_dim, fc1_dims)
    w2, b2 = linear(k2, fc1_dims, fc2_dims)
    wpi, bpi = linear(k3, fc2_dims, n_actions)
    wv, bv = linear(k4, fc2_dims, 1)
    return dict(w1=w1, b1=b1, w2=w2, b2=b2, wpi=wpi, bpi=bpi, wv=wv, bv=bv)


def reference_forward_f32(state, p):
    """Pure f32 reference matching the PyTorch module math."""
    h1 = jnp.maximum(state @ p["w1"] + p["b1"], 0.0)
    h2 = jnp.maximum(h1 @ p["w2"] + p["b2"], 0.0)
    return h2 @ p["wpi"] + p["bpi"], h2 @ p["wv"] + p["bv"]


def reference_forward_packed(state, packed, n_actions):
    """Mirrors the kernel's bf16-input / f32-accumulate / bf16-store math."""
    h1 = jnp.maximum(
        jnp.dot(state.astype(jnp.bfloat16), packed["w1"],
                preferred_element_type=jnp.float32) + packed["b1"], 0.0)
    h2 = jnp.maximum(
        jnp.dot(h1.astype(jnp.bfloat16), packed["w2"],
                preferred_element_type=jnp.float32) + packed["b2"], 0.0)
    out = jnp.dot(h2.astype(jnp.bfloat16), packed["w_heads"],
                  preferred_element_type=jnp.float32) + packed["b_heads"]
    out = out.astype(jnp.bfloat16).astype(jnp.float32)
    return out[:, :n_actions], out[:, n_actions:n_actions + 1]


# TODO(synk): optimizer (Adam) / .to(device) are training-side and not part of
# the forward pass, so they are intentionally not implemented here.

if __name__ == "__main__":
    key = jax.random.PRNGKey(0)
    k_params, k_state = jax.random.split(key)

    batch = 8
    input_dim = 8        # e.g. input_dims=[8] (small observation vector)
    n_actions = 4
    fc1_dims = 256
    fc2_dims = 256

    params = init_params(k_params, input_dim, n_actions, fc1_dims, fc2_dims)
    packed = pack_params(params)
    state = jax.random.normal(k_state, (batch, input_dim), jnp.float32)

    pi, v = actor_critic_forward(state, packed, n_actions=n_actions)
    jax.block_until_ready((pi, v))

    assert pi.shape == (batch, n_actions) and v.shape == (batch, 1)

    # Check against a reference that mirrors the kernel's bf16/f32 math.
    pi_k, v_k = reference_forward_packed(state, packed, n_actions)
    assert jnp.allclose(pi, pi_k, atol=2e-2, rtol=2e-2)
    assert jnp.allclose(v, v_k, atol=2e-2, rtol=2e-2)

    # Looser check against the full-f32 PyTorch-equivalent math (bf16 rounding).
    pi_f, v_f = reference_forward_f32(state, params)
    assert jnp.allclose(pi, pi_f, atol=5e-2, rtol=5e-2)
    assert jnp.allclose(v, v_f, atol=5e-2, rtol=5e-2)

    # Also exercise a larger, non-multiple-of-16 batch (multi-step grid path).
    big_state = jax.random.normal(k_state, (600, input_dim), jnp.float32)
    pi_b, v_b = actor_critic_forward(big_state, packed, n_actions=n_actions)
    jax.block_until_ready((pi_b, v_b))
    pi_br, v_br = reference_forward_packed(big_state, packed, n_actions)
    assert pi_b.shape == (600, n_actions) and v_b.shape == (600, 1)
    assert jnp.allclose(pi_b, pi_br, atol=2e-2, rtol=2e-2)
    assert jnp.allclose(v_b, v_br, atol=2e-2, rtol=2e-2)

    print("KERNEL_OK")
</pallas_src>

<mosaic_0001>
module attributes {stable_mosaic.version = 11 : i64} {
  func.func @actor_critic_kernel(%arg0: i32, %arg1: memref<16x8xbf16, #tpu.memory_space<vmem>>, %arg2: memref<8x256xbf16, #tpu.memory_space<vmem>>, %arg3: memref<1x256xf32, #tpu.memory_space<vmem>>, %arg4: memref<256x256xbf16, #tpu.memory_space<vmem>>, %arg5: memref<1x256xf32, #tpu.memory_space<vmem>>, %arg6: memref<256x128xbf16, #tpu.memory_space<vmem>>, %arg7: memref<1x128xf32, #tpu.memory_space<vmem>>, %arg8: memref<16x128xbf16, #tpu.memory_space<vmem>>) attributes {dimension_semantics = [#tpu.dimension_semantics<parallel>], iteration_bounds = array<i64: 1>, scalar_prefetch = 0 : i64, scratch_operands = 0 : i64, tpu.core_type = #tpu.core_type<tc>, window_params = [{transform_indices = @transform_0, window_bounds = array<i64: 16, 8>}, {pipeline_mode = #tpu.pipeline_mode<synchronous>, transform_indices = @transform_1, window_bounds = array<i64: 8, 256>}, {pipeline_mode = #tpu.pipeline_mode<synchronous>, transform_indices = @transform_2, window_bounds = array<i64: 1, 256>}, {pipeline_mode = #tpu.pipeline_mode<synchronous>, transform_indices = @transform_3, window_bounds = array<i64: 256, 256>}, {pipeline_mode = #tpu.pipeline_mode<synchronous>, transform_indices = @transform_4, window_bounds = array<i64: 1, 256>}, {pipeline_mode = #tpu.pipeline_mode<synchronous>, transform_indices = @transform_5, window_bounds = array<i64: 256, 128>}, {pipeline_mode = #tpu.pipeline_mode<synchronous>, transform_indices = @transform_6, window_bounds = array<i64: 1, 128>}, {transform_indices = @transform_7, window_bounds = array<i64: 16, 128>}]} {
    %c0 = arith.constant 0 : index
    %c0_0 = arith.constant 0 : index
    %0 = vector.load %arg1[%c0, %c0_0] : memref<16x8xbf16, #tpu.memory_space<vmem>>, vector<16x8xbf16>
    %c0_1 = arith.constant 0 : index
    %c0_2 = arith.constant 0 : index
    %1 = vector.load %arg2[%c0_1, %c0_2] : memref<8x256xbf16, #tpu.memory_space<vmem>>, vector<8x256xbf16>
    %cst = arith.constant dense<0.000000e+00> : vector<16x256xf32>
    %2 = tpu.matmul %0, %1, %cst {dimension_numbers = #tpu.dot_dimension_numbers<[1], [0], [0], [1], [0, 0, 1, 1], [], []>} : vector<16x8xbf16>, vector<8x256xbf16>, vector<16x256xf32> -> vector<16x256xf32>
    %c0_3 = arith.constant 0 : index
    %c0_4 = arith.constant 0 : index
    %3 = vector.load %arg3[%c0_3, %c0_4] : memref<1x256xf32, #tpu.memory_space<vmem>>, vector<1x256xf32>
    %4 = vector.broadcast %3 : vector<1x256xf32> to vector<16x256xf32>
    %5 = arith.addf %2, %4 : vector<16x256xf32>
    %cst_5 = arith.constant 0.000000e+00 : f32
    %6 = vector.broadcast %cst_5 : f32 to vector<16x256xf32>
    %7 = arith.maximumf %5, %6 : vector<16x256xf32>
    %8 = arith.truncf %7 : vector<16x256xf32> to vector<16x256xbf16>
    %c0_6 = arith.constant 0 : index
    %c0_7 = arith.constant 0 : index
    %9 = vector.load %arg4[%c0_6, %c0_7] : memref<256x256xbf16, #tpu.memory_space<vmem>>, vector<256x256xbf16>
    %cst_8 = arith.constant dense<0.000000e+00> : vector<16x256xf32>
    %10 = tpu.matmul %8, %9, %cst_8 {dimension_numbers = #tpu.dot_dimension_numbers<[1], [0], [0], [1], [0, 0, 1, 1], [], []>} : vector<16x256xbf16>, vector<256x256xbf16>, vector<16x256xf32> -> vector<16x256xf32>
    %c0_9 = arith.constant 0 : index
    %c0_10 = arith.constant 0 : index
    %11 = vector.load %arg5[%c0_9, %c0_10] : memref<1x256xf32, #tpu.memory_space<vmem>>, vector<1x256xf32>
    %12 = vector.broadcast %11 : vector<1x256xf32> to vector<16x256xf32>
    %13 = arith.addf %10, %12 : vector<16x256xf32>
    %cst_11 = arith.constant 0.000000e+00 : f32
    %14 = vector.broadcast %cst_11 : f32 to vector<16x256xf32>
    %15 = arith.maximumf %13, %14 : vector<16x256xf32>
    %16 = arith.truncf %15 : vector<16x256xf32> to vector<16x256xbf16>
    %c0_12 = arith.constant 0 : index
    %c0_13 = arith.constant 0 : index
    %17 = vector.load %arg6[%c0_12, %c0_13] : memref<256x128xbf16, #tpu.memory_space<vmem>>, vector<256x128xbf16>
    %cst_14 = arith.constant dense<0.000000e+00> : vector<16x128xf32>
    %18 = tpu.matmul %16, %17, %cst_14 {dimension_numbers = #tpu.dot_dimension_numbers<[1], [0], [0], [1], [0, 0, 1, 1], [], []>} : vector<16x256xbf16>, vector<256x128xbf16>, vector<16x128xf32> -> vector<16x128xf32>
    %c0_15 = arith.constant 0 : index
    %c0_16 = arith.constant 0 : index
    %19 = vector.load %arg7[%c0_15, %c0_16] : memref<1x128xf32, #tpu.memory_space<vmem>>, vector<1x128xf32>
    %20 = vector.broadcast %19 : vector<1x128xf32> to vector<16x128xf32>
    %21 = arith.addf %18, %20 : vector<16x128xf32>
    %22 = arith.truncf %21 : vector<16x128xf32> to vector<16x128xbf16>
    %c0_17 = arith.constant 0 : index
    %c0_18 = arith.constant 0 : index
    %23 = vector.load %arg8[%c0_17, %c0_18] : memref<16x128xbf16, #tpu.memory_space<vmem>>, vector<16x128xbf16>
    tpu.vector_store %arg8[%c0_17, %c0_18], %22 {strides = array<i32>} : memref<16x128xbf16, #tpu.memory_space<vmem>>, vector<16x128xbf16>,
    return
  }
  func.func @transform_0(%arg0: i32) -> (i32, i32) {
    %c0_i32 = arith.constant 0 : i32
    %c0_i32_0 = arith.constant 0 : i32
    return %arg0, %c0_i32 : i32, i32
  }
  func.func @transform_1(%arg0: i32) -> (i32, i32) {
    %c0_i32 = arith.constant 0 : i32
    %c0_i32_0 = arith.constant 0 : i32
    %c0_i32_1 = arith.constant 0 : i32
    return %c0_i32, %c0_i32_0 : i32, i32
  }
  func.func @transform_2(%arg0: i32) -> (i32, i32) {
    %c0_i32 = arith.constant 0 : i32
    %c0_i32_0 = arith.constant 0 : i32
    %c0_i32_1 = arith.constant 0 : i32
    return %c0_i32, %c0_i32_0 : i32, i32
  }
  func.func @transform_3(%arg0: i32) -> (i32, i32) {
    %c0_i32 = arith.constant 0 : i32
    %c0_i32_0 = arith.constant 0 : i32
    %c0_i32_1 = arith.constant 0 : i32
    return %c0_i32, %c0_i32_0 : i32, i32
  }
  func.func @transform_4(%arg0: i32) -> (i32, i32) {
    %c0_i32 = arith.constant 0 : i32
    %c0_i32_0 = arith.constant 0 : i32
    %c0_i32_1 = arith.constant 0 : i32
    return %c0_i32, %c0_i32_0 : i32, i32
  }
  func.func @transform_5(%arg0: i32) -> (i32, i32) {
    %c0_i32 = arith.constant 0 : i32
    %c0_i32_0 = arith.constant 0 : i32
    %c0_i32_1 = arith.constant 0 : i32
    return %c0_i32, %c0_i32_0 : i32, i32
  }
  func.func @transform_6(%arg0: i32) -> (i32, i32) {
    %c0_i32 = arith.constant 0 : i32
    %c0_i32_0 = arith.constant 0 : i32
    %c0_i32_1 = arith.constant 0 : i32
    return %c0_i32, %c0_i32_0 : i32, i32
  }
  func.func @transform_7(%arg0: i32) -> (i32, i32) {
    %c0_i32 = arith.constant 0 : i32
    %c0_i32_0 = arith.constant 0 : i32
    return %arg0, %c0_i32 : i32, i32
  }
}

</mosaic_0001>

<llo_original>
// kernel: actor_critic_forward.1
$region0: #{actor_critic_forward.1}
  #allocation0 [shape = 'u32[]', space=smem, size = 0x4, offset = 0x4, fixed_abs, tag = 'smem constant byte address 0x4 - core index']
  #allocation1 [shape = 'u32[144,128]{1,0:T(1,128)}', space=vmem, size = 0x12000, scoped, tag = 'internal scratch']
  %s0 = inlined_call_operand.vmem [shape: bf16[16,8], index: 0, kind: input, shape index: {}]
  %s1 = inlined_call_operand.vmem [shape: bf16[8,256], index: 1, kind: input, shape index: {}]
  %s2 = inlined_call_operand.vmem [shape: f32[1,256], index: 2, kind: input, shape index: {}]
  %s3 = inlined_call_operand.hbm [shape: bf16[256,256], index: 3, kind: input, shape index: {}]
  %s4 = inlined_call_operand.vmem [shape: f32[1,256], index: 4, kind: input, shape index: {}]
  %s5 = inlined_call_operand.hbm [shape: bf16[256,128], index: 5, kind: input, shape index: {}]
  %s6 = inlined_call_operand.vmem [shape: f32[1,128], index: 6, kind: input, shape index: {}]
  %s7 = inlined_call_operand.vmem [shape: bf16[16,128], index: 7, kind: output, shape index: {}]
  %s8 = sld [smem:[#allocation0]]
  $region46: #{actor_critic_forward.1} parent=0
    _
  %s10 = ssub.s32 1, %s8
  %s11 = scalar_select 0, %s10, %s8
  $region1: #{actor_critic_forward.1} parent=0
    #allocation2 [shape = 'u8[131072]{0}', space=vmem, size = 0x20000, scoped, tag = 'input window, operand 3, single buffered']
    #allocation3 [shape = 's32[1]{0}', space=sflag, size = 0x4, scoped, tag = 'scoped memory for actor_critic_forward.1']
    #allocation4 [shape = 'u8[65536]{0}', space=vmem, size = 0x10000, scoped, tag = 'input window, operand 5, single buffered']
    #allocation5 [shape = 's32[1]{0}', space=sflag, size = 0x4, scoped, tag = 'scoped memory for actor_critic_forward.1']
    %12 = vsyncpa [#allocation3], 0
    %13 = vsyncpa [#allocation5], 0
    // Predicated region
    $region2: #{actor_critic_forward.1} parent=1 // pred_check
      _
    $region3: #{actor_critic_forward.1} parent=1 // pred_check_branch
      %15 = sbr.rel (0) target = $region5
    $region4: #{actor_critic_forward.1} parent=1 // pred_region
      _
    $region5: #{actor_critic_forward.1} parent=1 // pred_fallthru
      _
    // Predicated region
    $region6: #{actor_critic_forward.1} parent=1 // pred_check
      _
    $region7: #{actor_critic_forward.1} parent=1 // pred_check_branch
      %17 = sbr.rel (0) target = $region9
    $region8: #{actor_critic_forward.1} parent=1 // pred_region
      _
    $region9: #{actor_critic_forward.1} parent=1 // pred_fallthru
      _
    // Predicated region
    $region10: #{actor_critic_forward.1} parent=1 // pred_check
      _
    $region11: #{actor_critic_forward.1} parent=1 // pred_check_branch
      %19 = sbr.rel (0) target = $region13
    $region12: #{actor_critic_forward.1} parent=1 // pred_region
      _
    $region13: #{actor_critic_forward.1} parent=1 // pred_fallthru
      _
    // Predicated region
    $region14: #{actor_critic_forward.1} parent=1 // pred_check
      _
    $region15: #{actor_critic_forward.1} parent=1 // pred_check_branch
      %21 = sbr.rel (0) target = $region17
    $region16: #{actor_critic_forward.1} parent=1 // pred_region
      %s23 = ssub.s32 4096, 4096
      %24 = vsyncadd [#allocation3], %s23
      %s25 = sshll.u32 [#allocation2], 4
      %s26 = int_to_ptr.vmem [resolvable:$true] %s25
      %31 = dma.hbm_to_vmem [thread:$0]  %s3, 4096, %s26, [#allocation3], 128, 128, 8
    $region17: #{actor_critic_forward.1} parent=1 // pred_fallthru
      _
    // Predicated region
    $region18: #{actor_critic_forward.1} parent=1 // pred_check
      _
    $region19: #{actor_critic_forward.1} parent=1 // pred_check_branch
      %33 = sbr.rel (0) target = $region21
    $region20: #{actor_critic_forward.1} parent=1 // pred_region
      _
    $region21: #{actor_critic_forward.1} parent=1 // pred_fallthru
      _
    // Predicated region
    $region22: #{actor_critic_forward.1} parent=1 // pred_check
      _
    $region23: #{actor_critic_forward.1} parent=1 // pred_check_branch
      %35 = sbr.rel (0) target = $region25
    $region24: #{actor_critic_forward.1} parent=1 // pred_region
      %s37 = ssub.s32 2048, 2048
      %38 = vsyncadd [#allocation5], %s37
      %s39 = sshll.u32 [#allocation4], 4
      %s40 = int_to_ptr.vmem [resolvable:$true] %s39
      %45 = dma.hbm_to_vmem [thread:$0]  %s5, 2048, %s40, [#allocation5], 64, 64, 4
    $region25: #{actor_critic_forward.1} parent=1 // pred_fallthru
      _
    // Predicated region
    $region26: #{actor_critic_forward.1} parent=1 // pred_check
      _
    $region27: #{actor_critic_forward.1} parent=1 // pred_check_branch
      %47 = sbr.rel (0) target = $region29
    $region28: #{actor_critic_forward.1} parent=1 // pred_region
      _
    $region29: #{actor_critic_forward.1} parent=1 // pred_fallthru
      _
    // Predicated region
    $region30: #{actor_critic_forward.1} parent=1 // pred_check
      _
    $region31: #{actor_critic_forward.1} parent=1 // pred_check_branch
      %49 = sbr.rel (0) target = $region33
    $region32: #{actor_critic_forward.1} parent=1 // pred_region
      %50 = dma.done [#allocation3], 4096
    $region33: #{actor_critic_forward.1} parent=1 // pred_fallthru
      _
    // Predicated region
    $region34: #{actor_critic_forward.1} parent=1 // pred_check
      _
    $region35: #{actor_critic_forward.1} parent=1 // pred_check_branch
      %52 = sbr.rel (0) target = $region37
    $region36: #{actor_critic_forward.1} parent=1 // pred_region
      %53 = dma.done [#allocation5], 2048
    $region37: #{actor_critic_forward.1} parent=1 // pred_fallthru
      _
    %v55 = vld [vmem:[%s0] sm:$0xf]
    %v56 = vld [vmem:[%s0 + $0x4] sm:$0xf]
    %v57 = vld [vmem:[%s1] sm:$0xff]
    %v58 = vld [vmem:[%s2] sm:$0x3]
    %v60 = vlaneseq
    %v61 = vshrl.u32 %v60, 7
    %v62 = vsub.s32 0, %v61
    %v63 = vrot.slane %v58, %v62
    %v64 = vlaneseq
    %v65 = vshrl.u32 %v64, 7
    %v66 = vsub.s32 1, %v65
    %v67 = vrot.slane %v58, %v66
    %v72 = vunpack.c.l.b16 %v55
    %v73 = vunpack.c.l.b16 %v56
    %v74 = vpack.c.b16 %v73, %v72
    %v76 = vunpack.c.l.b16 %v57
    %v77 = vunpack.c.h.b16 %v57
    %v78 = vpack.c.b16 %v76, %v76
    %v79 = vpack.c.b16 %v77, %v77
    %vm80 = vcmask 64512
    %v82 = vsel %vm80, %v74, 0
    %vm84 = vcmask 1043456
    %v86 = vsel %vm84, %v78, 0
    %v89 = vsel %vm84, %v79, 0
    %91 = vmatprep.subr.bf16.mxu0 %v89
    %92 = vmatpush1.bf16.msra.mxu0 %v86
    %93 = vmatprep.subr.bf16.mxu0 0
    %94 = vmatpush1.bf16.msra.mxu0 0
    %95 = vmatprep.subr.bf16.mxu0 0
    %96 = vmatpush1.bf16.msra.mxu0 0
    %97 = vmatprep.subr.bf16.mxu0 0
    %98 = vmatpush1.bf16.msra.mxu0 0
    %99 = vmatprep.subr.bf16.mxu0 0
    %100 = vmatpush1.bf16.msra.mxu0 0
    %101 = vmatprep.subr.bf16.mxu0 0
    %102 = vmatpush1.bf16.msra.mxu0 0
    %103 = vmatprep.subr.bf16.mxu0 0
    %104 = vmatpush1.bf16.msra.mxu0 0
    %105 = vmatprep.subr.bf16.mxu0 0
    %106 = vmatpush1.bf16.msra.mxu0 0
    %107 = vmatprep.subr.bf16.mxu0 0
    %108 = vmatpush1.bf16.msra.mxu0 0
    %109 = vmatprep.subr.bf16.mxu0 0
    %110 = vmatpush1.bf16.msra.mxu0 0
    %111 = vmatprep.subr.bf16.mxu0 0
    %112 = vmatpush1.bf16.msra.mxu0 0
    %113 = vmatprep.subr.bf16.mxu0 0
    %114 = vmatpush1.bf16.msra.mxu0 0
    %115 = vmatprep.subr.bf16.mxu0 0
    %116 = vmatpush1.bf16.msra.mxu0 0
    %117 = vmatprep.subr.bf16.mxu0 0
    %118 = vmatpush1.bf16.msra.mxu0 0
    %119 = vmatprep.subr.bf16.mxu0 0
    %120 = vmatpush1.bf16.msra.mxu0 0
    %121 = vmatprep.subr.bf16.mxu0 0
    %122 = vmatpush1.bf16.msra.mxu0 0
    %123 = vmatprep.mubr.bf16.mxu0 0
    %124 = vmatmul.mubr.bf16.gmra.mrb[0].mxu0 %v82
    %v125 = vpop.f32.mrb[0].mxu0
    %v126 = vadd.f32 %v63, %v125
    %v127 = vpop.f32.mrb[0].mxu0
    %v128 = vadd.f32 %v67, %v127
    %v129 = vpop.f32.mrb[0].mxu0
    %v130 = vadd.f32 %v63, %v129
    %v131 = vpop.f32.mrb[0].mxu0
    %v132 = vadd.f32 %v67, %v131
    %133 = vdwg.mxu0
    %v134 = vmax.f32 %v126, 0.0
    %v135 = vmax.f32 %v128, 0.0
    %v136 = vmax.f32 %v130, 0.0
    %v137 = vmax.f32 %v132, 0.0
    %v138 = vpack.c.bf16 %v136, %v134
    %v139 = vpack.c.bf16 %v137, %v135
    %v140 = vld [vmem:[#allocation2] sm:$0xff]
    %v141 = vld [vmem:[#allocation2 + $0x8] sm:$0xff]
    %v142 = vld [vmem:[#allocation2 + $0x10] sm:$0xff]
    %v143 = vld [vmem:[#allocation2 + $0x18] sm:$0xff]
    %v144 = vld [vmem:[#allocation2 + $0x20] sm:$0xff]
    %v145 = vld [vmem:[#allocation2 + $0x28] sm:$0xff]
    %v146 = vld [vmem:[#allocation2 + $0x30] sm:$0xff]
    %v147 = vld [vmem:[#allocation2 + $0x38] sm:$0xff]
    %v148 = vld [vmem:[#allocation2 + $0x40] sm:$0xff]
    %v149 = vld [vmem:[#allocation2 + $0x48] sm:$0xff]
    %v150 = vld [vmem:[#allocation2 + $0x50] sm:$0xff]
    %v151 = vld [vmem:[#allocation2 + $0x58] sm:$0xff]
    %v152 = vld [vmem:[#allocation2 + $0x60] sm:$0xff]
    %v153 = vld [vmem:[#allocation2 + $0x68] sm:$0xff]
    %v154 = vld [vmem:[#allocation2 + $0x70] sm:$0xff]
    %v155 = vld [vmem:[#allocation2 + $0x78] sm:$0xff]
    %v156 = vld [vmem:[#allocation2 + $0x80] sm:$0xff]
    %v157 = vld [vmem:[#allocation2 + $0x88] sm:$0xff]
    %v158 = vld [vmem:[#allocation2 + $0x90] sm:$0xff]
    %v159 = vld [vmem:[#allocation2 + $0x98] sm:$0xff]
    %v160 = vld [vmem:[#allocation2 + $0xa0] sm:$0xff]
    %v161 = vld [vmem:[#allocation2 + $0xa8] sm:$0xff]
    %v162 = vld [vmem:[#allocation2 + $0xb0] sm:$0xff]
    %v163 = vld [vmem:[#allocation2 + $0xb8] sm:$0xff]
    %v164 = vld [vmem:[#allocation2 + $0xc0] sm:$0xff]
    %v165 = vld [vmem:[#allocation2 + $0xc8] sm:$0xff]
    %v166 = vld [vmem:[#allocation2 + $0xd0] sm:$0xff]
    %v167 = vld [vmem:[#allocation2 + $0xd8] sm:$0xff]
    %v168 = vld [vmem:[#allocation2 + $0xe0] sm:$0xff]
    %v169 = vld [vmem:[#allocation2 + $0xe8] sm:$0xff]
    %v170 = vld [vmem:[#allocation2 + $0xf0] sm:$0xff]
    %v171 = vld [vmem:[#allocation2 + $0xf8] sm:$0xff]
    %v172 = vld [vmem:[%s4] sm:$0x3]
    %v174 = vlaneseq
    %v175 = vshrl.u32 %v174, 7
    %v176 = vsub.s32 0, %v175
    %v177 = vrot.slane %v172, %v176
    %v178 = vlaneseq
    %v179 = vshrl.u32 %v178, 7
    %v180 = vsub.s32 1, %v179
    %v181 = vrot.slane %v172, %v180
    %v216 = vunpack.c.l.b16 %v140
    %v217 = vunpack.c.h.b16 %v140
    %v218 = vunpack.c.l.b16 %v141
    %v219 = vunpack.c.h.b16 %v141
    %v220 = vunpack.c.l.b16 %v142
    %v221 = vunpack.c.h.b16 %v142
    %v222 = vunpack.c.l.b16 %v143
    %v223 = vunpack.c.h.b16 %v143
    %v224 = vunpack.c.l.b16 %v144
    %v225 = vunpack.c.h.b16 %v144
    %v226 = vunpack.c.l.b16 %v145
    %v227 = vunpack.c.h.b16 %v145
    %v228 = vunpack.c.l.b16 %v146
    %v229 = vunpack.c.h.b16 %v146
    %v230 = vunpack.c.l.b16 %v147
    %v231 = vunpack.c.h.b16 %v147
    %v232 = vunpack.c.l.b16 %v148
    %v233 = vunpack.c.h.b16 %v148
    %v234 = vunpack.c.l.b16 %v149
    %v235 = vunpack.c.h.b16 %v149
    %v236 = vunpack.c.l.b16 %v150
    %v237 = vunpack.c.h.b16 %v150
    %v238 = vunpack.c.l.b16 %v151
    %v239 = vunpack.c.h.b16 %v151
    %v240 = vunpack.c.l.b16 %v152
    %v241 = vunpack.c.h.b16 %v152
    %v242 = vunpack.c.l.b16 %v153
    %v243 = vunpack.c.h.b16 %v153
    %v244 = vunpack.c.l.b16 %v154
    %v245 = vunpack.c.h.b16 %v154
    %v246 = vunpack.c.l.b16 %v155
    %v247 = vunpack.c.h.b16 %v155
    %v248 = vunpack.c.l.b16 %v156
    %v249 = vunpack.c.h.b16 %v156
    %v250 = vunpack.c.l.b16 %v157
    %v251 = vunpack.c.h.b16 %v157
    %v252 = vunpack.c.l.b16 %v158
    %v253 = vunpack.c.h.b16 %v158
    %v254 = vunpack.c.l.b16 %v159
    %v255 = vunpack.c.h.b16 %v159
    %v256 = vunpack.c.l.b16 %v160
    %v257 = vunpack.c.h.b16 %v160
    %v258 = vunpack.c.l.b16 %v161
    %v259 = vunpack.c.h.b16 %v161
    %v260 = vunpack.c.l.b16 %v162
    %v261 = vunpack.c.h.b16 %v162
    %v262 = vunpack.c.l.b16 %v163
    %v263 = vunpack.c.h.b16 %v163
    %v264 = vunpack.c.l.b16 %v164
    %v265 = vunpack.c.h.b16 %v164
    %v266 = vunpack.c.l.b16 %v165
    %v267 = vunpack.c.h.b16 %v165
    %v268 = vunpack.c.l.b16 %v166
    %v269 = vunpack.c.h.b16 %v166
    %v270 = vunpack.c.l.b16 %v167
    %v271 = vunpack.c.h.b16 %v167
    %v272 = vunpack.c.l.b16 %v168
    %v273 = vunpack.c.h.b16 %v168
    %v274 = vunpack.c.l.b16 %v169
    %v275 = vunpack.c.h.b16 %v169
    %v276 = vunpack.c.l.b16 %v170
    %v277 = vunpack.c.h.b16 %v170
    %v278 = vunpack.c.l.b16 %v171
    %v279 = vunpack.c.h.b16 %v171
    %v280 = vpack.c.b16 %v218, %v216
    %v281 = vpack.c.b16 %v219, %v217
    %v282 = vpack.c.b16 %v222, %v220
    %v283 = vpack.c.b16 %v223, %v221
    %v284 = vpack.c.b16 %v226, %v224
    %v285 = vpack.c.b16 %v227, %v225
    %v286 = vpack.c.b16 %v230, %v228
    %v287 = vpack.c.b16 %v231, %v229
    %v288 = vpack.c.b16 %v234, %v232
    %v289 = vpack.c.b16 %v235, %v233
    %v290 = vpack.c.b16 %v238, %v236
    %v291 = vpack.c.b16 %v239, %v237
    %v292 = vpack.c.b16 %v242, %v240
    %v293 = vpack.c.b16 %v243, %v241
    %v294 = vpack.c.b16 %v246, %v244
    %v295 = vpack.c.b16 %v247, %v245
    %v296 = vpack.c.b16 %v250, %v248
    %v297 = vpack.c.b16 %v251, %v249
    %v298 = vpack.c.b16 %v254, %v252
    %v299 = vpack.c.b16 %v255, %v253
    %v300 = vpack.c.b16 %v258, %v256
    %v301 = vpack.c.b16 %v259, %v257
    %v302 = vpack.c.b16 %v262, %v260
    %v303 = vpack.c.b16 %v263, %v261
    %v304 = vpack.c.b16 %v266, %v264
    %v305 = vpack.c.b16 %v267, %v265
    %v306 = vpack.c.b16 %v270, %v268
    %v307 = vpack.c.b16 %v271, %v269
    %v308 = vpack.c.b16 %v274, %v272
    %v309 = vpack.c.b16 %v275, %v273
    %v310 = vpack.c.b16 %v278, %v276
    %v311 = vpack.c.b16 %v279, %v277
    %344 = vmatprep.subr.bf16.mxu0 %v281
    %345 = vmatpush1.bf16.msra.mxu0 %v280
    %346 = vmatprep.subr.bf16.mxu0 %v283
    %347 = vmatpush1.bf16.msra.mxu0 %v282
    %348 = vmatprep.subr.bf16.mxu0 %v285
    %349 = vmatpush1.bf16.msra.mxu0 %v284
    %350 = vmatprep.subr.bf16.mxu0 %v287
    %351 = vmatpush1.bf16.msra.mxu0 %v286
    %352 = vmatprep.subr.bf16.mxu0 %v289
    %353 = vmatpush1.bf16.msra.mxu0 %v288
    %354 = vmatprep.subr.bf16.mxu0 %v291
    %355 = vmatpush1.bf16.msra.mxu0 %v290
    %356 = vmatprep.subr.bf16.mxu0 %v293
    %357 = vmatpush1.bf16.msra.mxu0 %v292
    %358 = vmatprep.subr.bf16.mxu0 %v295
    %359 = vmatpush1.bf16.msra.mxu0 %v294
    %360 = vmatprep.subr.bf16.mxu0 %v297
    %361 = vmatpush1.bf16.msra.mxu0 %v296
    %362 = vmatprep.subr.bf16.mxu0 %v299
    %363 = vmatpush1.bf16.msra.mxu0 %v298
    %364 = vmatprep.subr.bf16.mxu0 %v301
    %365 = vmatpush1.bf16.msra.mxu0 %v300
    %366 = vmatprep.subr.bf16.mxu0 %v303
    %367 = vmatpush1.bf16.msra.mxu0 %v302
    %368 = vmatprep.subr.bf16.mxu0 %v305
    %369 = vmatpush1.bf16.msra.mxu0 %v304
    %370 = vmatprep.subr.bf16.mxu0 %v307
    %371 = vmatpush1.bf16.msra.mxu0 %v306
    %372 = vmatprep.subr.bf16.mxu0 %v309
    %373 = vmatpush1.bf16.msra.mxu0 %v308
    %374 = vmatprep.subr.bf16.mxu0 %v311
    %375 = vmatpush1.bf16.msra.mxu0 %v310
    %376 = vmatprep.mubr.bf16.mxu0 %v139
    %377 = vmatmul.mubr.bf16.gmra.mrb[0].mxu0 %v138
    %v378 = vpop.f32.mrb[0].mxu0
    %v379 = vadd.f32 %v177, %v378
    %v380 = vpop.f32.mrb[0].mxu0
    %v381 = vadd.f32 %v181, %v380
    %v382 = vpop.f32.mrb[0].mxu0
    %v383 = vadd.f32 %v177, %v382
    %v384 = vpop.f32.mrb[0].mxu0
    %v385 = vadd.f32 %v181, %v384
    %386 = vdwg.mxu0
    %v387 = vmax.f32 %v379, 0.0
    %v388 = vmax.f32 %v381, 0.0
    %v389 = vmax.f32 %v383, 0.0
    %v390 = vmax.f32 %v385, 0.0
    %v391 = vpack.c.bf16 %v389, %v387
    %v392 = vpack.c.bf16 %v390, %v388
    %v393 = vld [vmem:[#allocation4] sm:$0xf]
    %v394 = vld [vmem:[#allocation4 + $0x4] sm:$0xf]
    %v395 = vld [vmem:[#allocation4 + $0x8] sm:$0xf]
    %v396 = vld [vmem:[#allocation4 + $0xc] sm:$0xf]
    %v397 = vld [vmem:[#allocation4 + $0x10] sm:$0xf]
    %v398 = vld [vmem:[#allocation4 + $0x14] sm:$0xf]
    %v399 = vld [vmem:[#allocation4 + $0x18] sm:$0xf]
    %v400 = vld [vmem:[#allocation4 + $0x1c] sm:$0xf]
    %v401 = vld [vmem:[#allocation4 + $0x20] sm:$0xf]
    %v402 = vld [vmem:[#allocation4 + $0x24] sm:$0xf]
    %v403 = vld [vmem:[#allocation4 + $0x28] sm:$0xf]
    %v404 = vld [vmem:[#allocation4 + $0x2c] sm:$0xf]
    %v405 = vld [vmem:[#allocation4 + $0x30] sm:$0xf]
    %v406 = vld [vmem:[#allocation4 + $0x34] sm:$0xf]
    %v407 = vld [vmem:[#allocation4 + $0x38] sm:$0xf]
    %v408 = vld [vmem:[#allocation4 + $0x3c] sm:$0xf]
    %v409 = vld [vmem:[#allocation4 + $0x40] sm:$0xf]
    %v410 = vld [vmem:[#allocation4 + $0x44] sm:$0xf]
    %v411 = vld [vmem:[#allocation4 + $0x48] sm:$0xf]
    %v412 = vld [vmem:[#allocation4 + $0x4c] sm:$0xf]
    %v413 = vld [vmem:[#allocation4 + $0x50] sm:$0xf]
    %v414 = vld [vmem:[#allocation4 + $0x54] sm:$0xf]
    %v415 = vld [vmem:[#allocation4 + $0x58] sm:$0xf]
    %v416 = vld [vmem:[#allocation4 + $0x5c] sm:$0xf]
    %v417 = vld [vmem:[#allocation4 + $0x60] sm:$0xf]
    %v418 = vld [vmem:[#allocation4 + $0x64] sm:$0xf]
    %v419 = vld [vmem:[#allocation4 + $0x68] sm:$0xf]
    %v420 = vld [vmem:[#allocation4 + $0x6c] sm:$0xf]
    %v421 = vld [vmem:[#allocation4 + $0x70] sm:$0xf]
    %v422 = vld [vmem:[#allocation4 + $0x74] sm:$0xf]
    %v423 = vld [vmem:[#allocation4 + $0x78] sm:$0xf]
    %v424 = vld [vmem:[#allocation4 + $0x7c] sm:$0xf]
    %v425 = vld [vmem:[%s6] sm:$0x1]
    %v427 = vlaneseq
    %v428 = vshrl.u32 %v427, 7
    %v429 = vsub.s32 0, %v428
    %v430 = vrot.slane %v425, %v429
    %v464 = vunpack.c.l.b16 %v393
    %v465 = vunpack.c.l.b16 %v394
    %v466 = vunpack.c.l.b16 %v395
    %v467 = vunpack.c.l.b16 %v396
    %v468 = vunpack.c.l.b16 %v397
    %v469 = vunpack.c.l.b16 %v398
    %v470 = vunpack.c.l.b16 %v399
    %v471 = vunpack.c.l.b16 %v400
    %v472 = vunpack.c.l.b16 %v401
    %v473 = vunpack.c.l.b16 %v402
    %v474 = vunpack.c.l.b16 %v403
    %v475 = vunpack.c.l.b16 %v404
    %v476 = vunpack.c.l.b16 %v405
    %v477 = vunpack.c.l.b16 %v406
    %v478 = vunpack.c.l.b16 %v407
    %v479 = vunpack.c.l.b16 %v408
    %v480 = vunpack.c.l.b16 %v409
    %v481 = vunpack.c.l.b16 %v410
    %v482 = vunpack.c.l.b16 %v411
    %v483 = vunpack.c.l.b16 %v412
    %v484 = vunpack.c.l.b16 %v413
    %v485 = vunpack.c.l.b16 %v414
    %v486 = vunpack.c.l.b16 %v415
    %v487 = vunpack.c.l.b16 %v416
    %v488 = vunpack.c.l.b16 %v417
    %v489 = vunpack.c.l.b16 %v418
    %v490 = vunpack.c.l.b16 %v419
    %v491 = vunpack.c.l.b16 %v420
    %v492 = vunpack.c.l.b16 %v421
    %v493 = vunpack.c.l.b16 %v422
    %v494 = vunpack.c.l.b16 %v423
    %v495 = vunpack.c.l.b16 %v424
    %v496 = vpack.c.b16 %v465, %v464
    %v497 = vpack.c.b16 %v467, %v466
    %v498 = vpack.c.b16 %v469, %v468
    %v499 = vpack.c.b16 %v471, %v470
    %v500 = vpack.c.b16 %v473, %v472
    %v501 = vpack.c.b16 %v475, %v474
    %v502 = vpack.c.b16 %v477, %v476
    %v503 = vpack.c.b16 %v479, %v478
    %v504 = vpack.c.b16 %v481, %v480
    %v505 = vpack.c.b16 %v483, %v482
    %v506 = vpack.c.b16 %v485, %v484
    %v507 = vpack.c.b16 %v487, %v486
    %v508 = vpack.c.b16 %v489, %v488
    %v509 = vpack.c.b16 %v491, %v490
    %v510 = vpack.c.b16 %v493, %v492
    %v511 = vpack.c.b16 %v495, %v494
    %528 = vmatprep.subr.bf16.mxu0 0
    %529 = vmatpush1.bf16.msra.mxu0 %v496
    %530 = vmatprep.subr.bf16.mxu0 0
    %531 = vmatpush1.bf16.msra.mxu0 %v497
    %532 = vmatprep.subr.bf16.mxu0 0
    %533 = vmatpush1.bf16.msra.mxu0 %v498
    %534 = vmatprep.subr.bf16.mxu0 0
    %535 = vmatpush1.bf16.msra.mxu0 %v499
    %536 = vmatprep.subr.bf16.mxu0 0
    %537 = vmatpush1.bf16.msra.mxu0 %v500
    %538 = vmatprep.subr.bf16.mxu0 0
    %539 = vmatpush1.bf16.msra.mxu0 %v501
    %540 = vmatprep.subr.bf16.mxu0 0
    %541 = vmatpush1.bf16.msra.mxu0 %v502
    %542 = vmatprep.subr.bf16.mxu0 0
    %543 = vmatpush1.bf16.msra.mxu0 %v503
    %544 = vmatprep.subr.bf16.mxu0 0
    %545 = vmatpush1.bf16.msra.mxu0 %v504
    %546 = vmatprep.subr.bf16.mxu0 0
    %547 = vmatpush1.bf16.msra.mxu0 %v505
    %548 = vmatprep.subr.bf16.mxu0 0
    %549 = vmatpush1.bf16.msra.mxu0 %v506
    %550 = vmatprep.subr.bf16.mxu0 0
    %551 = vmatpush1.bf16.msra.mxu0 %v507
    %552 = vmatprep.subr.bf16.mxu0 0
    %553 = vmatpush1.bf16.msra.mxu0 %v508
    %554 = vmatprep.subr.bf16.mxu0 0
    %555 = vmatpush1.bf16.msra.mxu0 %v509
    %556 = vmatprep.subr.bf16.mxu0 0
    %557 = vmatpush1.bf16.msra.mxu0 %v510
    %558 = vmatprep.subr.bf16.mxu0 0
    %559 = vmatpush1.bf16.msra.mxu0 %v511
    %560 = vmatprep.mubr.bf16.mxu0 %v392
    %561 = vmatmul.mubr.bf16.gmra.mrb[0].mxu0 %v391
    %v562 = vpop.f32.mrb[0].mxu0
    %v563 = vadd.f32 %v430, %v562
    %v564 = vpop.f32.mrb[0].mxu0
    %v565 = vpop.f32.mrb[0].mxu0
    %v566 = vadd.f32 %v430, %v565
    %v567 = vpop.f32.mrb[0].mxu0
    %568 = vdwg.mxu0
    %v569 = vpack.c.bf16 %v566, %v563
    %v571 = vunpack.c.l.b16 %v569
    %v572 = vunpack.c.h.b16 %v569
    %v573 = vpack.c.b16 %v571, %v571
    %v574 = vpack.c.b16 %v572, %v572
    %577 = vst [vmem:[%s7] sm:$0xf] %v573
    %578 = vst [vmem:[%s7 + $0x4] sm:$0xf] %v574
    // Predicated region
    $region38: #{actor_critic_forward.1} parent=1 // pred_check
      _
    $region39: #{actor_critic_forward.1} parent=1 // pred_check_branch
      %580 = sbr.rel (0) target = $region41
    $region40: #{actor_critic_forward.1} parent=1 // pred_region
      _
    $region41: #{actor_critic_forward.1} parent=1 // pred_fallthru
      _
    // Predicated region
    $region42: #{actor_critic_forward.1} parent=1 // pred_check
      _
    $region43: #{actor_critic_forward.1} parent=1 // pred_check_branch
      %582 = sbr.rel (0) target = $region45
    $region44: #{actor_critic_forward.1} parent=1 // pred_region
      _
    $region45: #{actor_critic_forward.1} parent=1 // pred_fallthru
      _
    %583 = vsyncpa [#allocation3], 1
    %584 = vsyncpa [#allocation5], 1

</llo_original>
